<compile_context>
chip_gen: v6e
topology: v6e:2x2x1
jax: 0.10.0
libtpu: 0.0.40
codegen_flags: <defaults>
</compile_context>

<pallas_src>
import functools

import jax
import jax.numpy as jnp
from jax import lax
from jax.experimental import pallas as pl
from jax.experimental.pallas import tpu as pltpu


def dqn_kernel(xt_ref, w3_ref, w5_ref, out_ref, *, mxu_dtype):
    # xt:  [obs, TB]   (batch on lanes)
    # w3:  [48, obs]   (PyTorch layout, used directly as MXU LHS)
    # w5:  [A, 48]
    # out: [A, TB]     (lane-dense store along batch)
    xt = xt_ref[...].astype(mxu_dtype)

    # fc3: h_T = w3 @ x_T  -> [48, TB], f32 accumulate on the MXU.
    h = lax.dot_general(
        w3_ref[...], xt,
        dimension_numbers=(((1,), (0,)), ((), ())),
        preferred_element_type=jnp.float32,
    )

    # do4: Dropout(p=0.3) -> identity in eval/inference mode.
    # TODO(synk): training-mode dropout would need pltpu.prng_seed/prng_random_bits.
    # relu (f32 on the VPU)
    h = jnp.maximum(h, 0.0)

    # fc5: logits_T = w5 @ h_T -> [A, TB]
    logits = lax.dot_general(
        w5_ref[...], h.astype(mxu_dtype),
        dimension_numbers=(((1,), (0,)), ((), ())),
        preferred_element_type=jnp.float32,
    )

    # sm6: numerically stable softmax over the action axis (axis 0 = sublanes,
    # so the reduce touches only A rows and the batch lanes stay dense).
    m = jnp.max(logits, axis=0, keepdims=True)
    e = jnp.exp(logits - m)
    denom = jnp.sum(e, axis=0, keepdims=True)
    inv = pl.reciprocal(denom, approx=False)   # divide -> EUP slot, VALU stays free
    out_ref[...] = (e * inv).astype(out_ref.dtype)


def _round_up(n, m):
    return ((n + m - 1) // m) * m


@functools.partial(jax.jit, static_argnames=("block_b", "mxu_bf16"))
def dqn_forward_t(x_t, w3, w5, block_b=1024, mxu_bf16=False):
    """Feature-major entry point: x_t [obs, B] -> probs [A, B].

    Preferred in a steady-state inference loop: no host-side relayout HLOs.
    """
    obs, B = x_t.shape
    hidden = w3.shape[0]
    A = w5.shape[0]

    mxu_dtype = jnp.bfloat16 if mxu_bf16 else x_t.dtype
    # Cast weights once, outside the kernel (they are VMEM-resident anyway).
    w3 = w3.astype(mxu_dtype)
    w5 = w5.astype(mxu_dtype)

    # Batch tile: cap at 1024 lanes so the [48, tb] f32 hidden activation stays
    # within the 64-vreg file (48 vregs at tb=1024); collapse the grid to (1,)
    # whenever B fits in a single tile (no padding needed -> full-array block).
    tb_cap = max(_round_up(min(block_b, 1024), 128), 128)
    if B <= tb_cap:
        tb, b_pad = B, B
    else:
        tb = tb_cap
        b_pad = _round_up(B, tb)

    x_pad = x_t if b_pad == B else jnp.pad(x_t, ((0, 0), (0, b_pad - B)))
    grid = (b_pad // tb,)

    # Advisory cost estimate: helps XLA schedule neighboring ops around this
    # dispatch-dominated custom call.
    flops = 2 * b_pad * (obs * hidden + hidden * A)
    transcendentals = A * b_pad
    bytes_accessed = 4 * (b_pad * obs + b_pad * A) + w3.size * w3.dtype.itemsize \
        + w5.size * w5.dtype.itemsize

    out_t = pl.pallas_call(
        functools.partial(dqn_kernel, mxu_dtype=mxu_dtype),
        out_shape=jax.ShapeDtypeStruct((A, b_pad), x_t.dtype),
        grid=grid,
        in_specs=[
            # x tiles: pipelined along the batch grid (default space = VMEM).
            pl.BlockSpec((obs, tb), lambda i: (0, i)),
            # weights: full-array blocks, resident across all grid steps.
            pl.BlockSpec((hidden, obs), lambda i: (0, 0)),
            pl.BlockSpec((A, hidden), lambda i: (0, 0)),
        ],
        out_specs=pl.BlockSpec((A, tb), lambda i: (0, i)),
        compiler_params=pltpu.CompilerParams(
            dimension_semantics=("parallel",),
        ),
        cost_estimate=pl.CostEstimate(
            flops=flops,
            transcendentals=transcendentals,
            bytes_accessed=bytes_accessed,
        ),
    )(x_pad, w3, w5)

    if b_pad != B:
        out_t = out_t[:, :B]
    return out_t


@functools.partial(jax.jit, static_argnames=("block_b", "mxu_bf16"))
def dqn_forward(x, w3, w5, block_b=1024, mxu_bf16=False):
    """PyTorch-layout convenience wrapper: x [B, obs] -> probs [B, A].

    NOTE: adds one transpose on each side of the kernel; prefer dqn_forward_t
    (feature-major in/out) when called in a tight inference loop.
    """
    return dqn_forward_t(x.T, w3, w5, block_b=block_b, mxu_bf16=mxu_bf16).T


def reference_forward(x, w3, w5):
    h = jnp.maximum(x @ w3.T, 0.0)
    logits = h @ w5.T
    return jax.nn.softmax(logits, axis=-1)


if __name__ == "__main__":
    observation_space = 4   # CartPole observation dim
    num_actions = 2         # CartPole action dim
    hidden = 48
    batch = 256             # small inference batch -> grid collapses to (1,)

    key = jax.random.PRNGKey(0)
    kx, k3, k5 = jax.random.split(key, 3)

    x = jax.random.normal(kx, (batch, observation_space), dtype=jnp.float32)

    # Deterministic init mimicking nn.Linear (uniform in +/- 1/sqrt(fan_in)).
    b3 = 1.0 / jnp.sqrt(jnp.float32(observation_space))
    w3 = jax.random.uniform(k3, (hidden, observation_space),
                            dtype=jnp.float32, minval=-b3, maxval=b3)
    b5 = 1.0 / jnp.sqrt(jnp.float32(hidden))
    w5 = jax.random.uniform(k5, (num_actions, hidden),
                            dtype=jnp.float32, minval=-b5, maxval=b5)

    ref = reference_forward(x, w3, w5)

    # 1) Feature-major fast path (no host-side relayouts), grid=(1,).
    out_t = jax.block_until_ready(dqn_forward_t(x.T, w3, w5))
    assert out_t.shape == (num_actions, batch)
    assert jnp.allclose(out_t, ref.T, atol=1e-5, rtol=1e-5), \
        float(jnp.max(jnp.abs(out_t - ref.T)))

    # 2) PyTorch-layout wrapper parity.
    out = jax.block_until_ready(dqn_forward(x, w3, w5))
    assert out.shape == (batch, num_actions)
    assert jnp.allclose(out, ref, atol=1e-5, rtol=1e-5), \
        float(jnp.max(jnp.abs(out - ref)))
    assert jnp.allclose(jnp.sum(out, axis=-1), 1.0, atol=1e-5)

    # 3) Exercise the multi-tile + padding path (B > 1024 -> grid=(2,)).
    xb = jax.random.normal(kx, (1300, observation_space), dtype=jnp.float32)
    out_big = jax.block_until_ready(dqn_forward_t(xb.T, w3, w5))
    ref_big = reference_forward(xb, w3, w5)
    assert out_big.shape == (num_actions, 1300)
    assert jnp.allclose(out_big, ref_big.T, atol=1e-5, rtol=1e-5), \
        float(jnp.max(jnp.abs(out_big - ref_big.T)))

    print("KERNEL_OK")
</pallas_src>

<mosaic_0001>
module attributes {stable_mosaic.version = 11 : i64} {
  func.func @dqn_kernel(%arg0: i32, %arg1: memref<4x256xf32, #tpu.memory_space<vmem>>, %arg2: memref<48x4xf32, #tpu.memory_space<vmem>>, %arg3: memref<2x48xf32, #tpu.memory_space<vmem>>, %arg4: memref<2x256xf32, #tpu.memory_space<vmem>>) attributes {dimension_semantics = [#tpu.dimension_semantics<parallel>], iteration_bounds = array<i64: 1>, scalar_prefetch = 0 : i64, scratch_operands = 0 : i64, tpu.core_type = #tpu.core_type<tc>, window_params = [{transform_indices = @transform_0, window_bounds = array<i64: 4, 256>}, {pipeline_mode = #tpu.pipeline_mode<synchronous>, transform_indices = @transform_1, window_bounds = array<i64: 48, 4>}, {pipeline_mode = #tpu.pipeline_mode<synchronous>, transform_indices = @transform_2, window_bounds = array<i64: 2, 48>}, {transform_indices = @transform_3, window_bounds = array<i64: 2, 256>}]} {
    %c0 = arith.constant 0 : index
    %c0_0 = arith.constant 0 : index
    %0 = vector.load %arg1[%c0, %c0_0] : memref<4x256xf32, #tpu.memory_space<vmem>>, vector<4x256xf32>
    %c0_1 = arith.constant 0 : index
    %c0_2 = arith.constant 0 : index
    %1 = vector.load %arg2[%c0_1, %c0_2] : memref<48x4xf32, #tpu.memory_space<vmem>>, vector<48x4xf32>
    %cst = arith.constant dense<0.000000e+00> : vector<48x256xf32>
    %2 = tpu.matmul %1, %0, %cst {dimension_numbers = #tpu.dot_dimension_numbers<[1], [0], [0], [1], [0, 0, 1, 1], [], []>} : vector<48x4xf32>, vector<4x256xf32>, vector<48x256xf32> -> vector<48x256xf32>
    %cst_3 = arith.constant 0.000000e+00 : f32
    %3 = vector.broadcast %cst_3 : f32 to vector<48x256xf32>
    %4 = arith.maximumf %2, %3 : vector<48x256xf32>
    %c0_4 = arith.constant 0 : index
    %c0_5 = arith.constant 0 : index
    %5 = vector.load %arg3[%c0_4, %c0_5] : memref<2x48xf32, #tpu.memory_space<vmem>>, vector<2x48xf32>
    %cst_6 = arith.constant dense<0.000000e+00> : vector<2x256xf32>
    %6 = tpu.matmul %5, %4, %cst_6 {dimension_numbers = #tpu.dot_dimension_numbers<[1], [0], [0], [1], [0, 0, 1, 1], [], []>} : vector<2x48xf32>, vector<48x256xf32>, vector<2x256xf32> -> vector<2x256xf32>
    %cst_7 = arith.constant dense<0xFF800000> : vector<256xf32>
    %7 = vector.multi_reduction <maximumf>, %6, %cst_7 [0] : vector<2x256xf32> to vector<256xf32>
    %8 = vector.shape_cast %7 : vector<256xf32> to vector<1x256xf32>
    %9 = vector.broadcast %8 : vector<1x256xf32> to vector<2x256xf32>
    %10 = arith.subf %6, %9 : vector<2x256xf32>
    %11 = math.exp %10 : vector<2x256xf32>
    %cst_8 = arith.constant dense<0.000000e+00> : vector<256xf32>
    %12 = vector.multi_reduction <add>, %11, %cst_8 [0] : vector<2x256xf32> to vector<256xf32>
    %13 = vector.shape_cast %12 : vector<256xf32> to vector<1x256xf32>
    %14 = tpu.reciprocal %13 : vector<1x256xf32> -> vector<1x256xf32>
    %15 = vector.broadcast %14 : vector<1x256xf32> to vector<2x256xf32>
    %16 = arith.mulf %11, %15 : vector<2x256xf32>
    %c0_9 = arith.constant 0 : index
    %c0_10 = arith.constant 0 : index
    %17 = vector.load %arg4[%c0_9, %c0_10] : memref<2x256xf32, #tpu.memory_space<vmem>>, vector<2x256xf32>
    tpu.vector_store %arg4[%c0_9, %c0_10], %16 {strides = array<i32>} : memref<2x256xf32, #tpu.memory_space<vmem>>, vector<2x256xf32>,
    return
  }
  func.func @transform_0(%arg0: i32) -> (i32, i32) {
    %c0_i32 = arith.constant 0 : i32
    %c0_i32_0 = arith.constant 0 : i32
    return %c0_i32, %arg0 : i32, i32
  }
  func.func @transform_1(%arg0: i32) -> (i32, i32) {
    %c0_i32 = arith.constant 0 : i32
    %c0_i32_0 = arith.constant 0 : i32
    %c0_i32_1 = arith.constant 0 : i32
    return %c0_i32, %c0_i32_0 : i32, i32
  }
  func.func @transform_2(%arg0: i32) -> (i32, i32) {
    %c0_i32 = arith.constant 0 : i32
    %c0_i32_0 = arith.constant 0 : i32
    %c0_i32_1 = arith.constant 0 : i32
    return %c0_i32, %c0_i32_0 : i32, i32
  }
  func.func @transform_3(%arg0: i32) -> (i32, i32) {
    %c0_i32 = arith.constant 0 : i32
    %c0_i32_0 = arith.constant 0 : i32
    return %c0_i32, %arg0 : i32, i32
  }
}

</mosaic_0001>

<llo_original>
// kernel: dqn_forward_t.1
$region0: #{dqn_forward_t.1}
  #allocation0 [shape = 'u32[]', space=smem, size = 0x4, offset = 0x4, fixed_abs, tag = 'smem constant byte address 0x4 - core index']
  #allocation1 [shape = 'u32[144,128]{1,0:T(1,128)}', space=vmem, size = 0x12000, scoped, tag = 'internal scratch']
  %s0 = inlined_call_operand.vmem [shape: f32[4,256], index: 0, kind: input, shape index: {}]
  %s1 = inlined_call_operand.vmem [shape: f32[48,4], index: 1, kind: input, shape index: {}]
  %s2 = inlined_call_operand.vmem [shape: f32[2,48], index: 2, kind: input, shape index: {}]
  %s3 = inlined_call_operand.hbm [shape: f32[2,256], index: 3, kind: output, shape index: {}]
  %s4 = sld [smem:[#allocation0]]
  $region22: #{dqn_forward_t.1} parent=0
    _
  %s6 = ssub.s32 1, %s4
  %s7 = scalar_select 0, %s6, %s4
  $region1: #{dqn_forward_t.1} parent=0
    #allocation2 [shape = 'u8[2048]{0}', space=vmem, size = 0x800, scoped, tag = 'output window, operand 0, single buffered']
    #allocation3 [shape = 's32[1]{0}', space=sflag, size = 0x4, scoped, tag = 'scoped memory for dqn_forward_t.1']
    %8 = vsyncpa [#allocation3], 0
    // Predicated region
    $region2: #{dqn_forward_t.1} parent=1 // pred_check
      _
    $region3: #{dqn_forward_t.1} parent=1 // pred_check_branch
      %10 = sbr.rel (0) target = $region5
    $region4: #{dqn_forward_t.1} parent=1 // pred_region
      _
    $region5: #{dqn_forward_t.1} parent=1 // pred_fallthru
      _
    // Predicated region
    $region6: #{dqn_forward_t.1} parent=1 // pred_check
      _
    $region7: #{dqn_forward_t.1} parent=1 // pred_check_branch
      %12 = sbr.rel (0) target = $region9
    $region8: #{dqn_forward_t.1} parent=1 // pred_region
      _
    $region9: #{dqn_forward_t.1} parent=1 // pred_fallthru
      _
    // Predicated region
    $region10: #{dqn_forward_t.1} parent=1 // pred_check
      _
    $region11: #{dqn_forward_t.1} parent=1 // pred_check_branch
      %14 = sbr.rel (0) target = $region13
    $region12: #{dqn_forward_t.1} parent=1 // pred_region
      _
    $region13: #{dqn_forward_t.1} parent=1 // pred_fallthru
      _
    %v15 = vld [vmem:[%s0] sm:$0xff]
    %v16 = vld [vmem:[%s1] sm:$0xff]
    %v17 = vld [vmem:[%s1 + $0x8] sm:$0xff]
    %v18 = vld [vmem:[%s1 + $0x10] sm:$0xff]
    %v19 = vld [vmem:[%s1 + $0x18] sm:$0xff]
    %v20 = vld [vmem:[%s1 + $0x20] sm:$0xff]
    %v21 = vld [vmem:[%s1 + $0x28] sm:$0xff]
    %v23 = vcombine.high %v15, %v15
    %vm24 = vcmask 31744
    %v26 = vsel %vm24, %v16, 0
    %v29 = vsel %vm24, %v17, 0
    %v32 = vsel %vm24, %v18, 0
    %v35 = vsel %vm24, %v19, 0
    %v38 = vsel %vm24, %v20, 0
    %v41 = vsel %vm24, %v21, 0
    %vm43 = vcmask 1043456
    %v44 = vsel %vm43, %v15, 0
    %v46 = vsel %vm43, %v23, 0
    %48 = vmatprep.subr.mxu0 0.0
    %49 = vmatpush1.msra.mxu0 0.0
    %50 = vmatprep.subr.mxu0 0.0
    %51 = vmatpush1.msra.mxu0 0.0
    %52 = vmatprep.subr.mxu0 0.0
    %53 = vmatpush1.msra.mxu0 0.0
    %54 = vmatprep.subr.mxu0 0.0
    %55 = vmatpush1.msra.mxu0 0.0
    %56 = vmatprep.subr.mxu0 0.0
    %57 = vmatpush1.msra.mxu0 0.0
    %58 = vmatprep.subr.mxu0 0.0
    %59 = vmatpush1.msra.mxu0 0.0
    %60 = vmatprep.subr.mxu0 0.0
    %61 = vmatpush1.msra.mxu0 0.0
    %62 = vmatprep.subr.mxu0 0.0
    %63 = vmatpush1.msra.mxu0 0.0
    %64 = vmatprep.subr.mxu0 0.0
    %65 = vmatpush1.msra.mxu0 0.0
    %66 = vmatprep.subr.mxu0 0.0
    %67 = vmatpush1.msra.mxu0 0.0
    %68 = vmatprep.subr.mxu0 0.0
    %69 = vmatpush1.msra.mxu0 0.0
    %70 = vmatprep.subr.mxu0 0.0
    %71 = vmatpush1.msra.mxu0 0.0
    %72 = vmatprep.subr.mxu0 0.0
    %73 = vmatpush1.msra.mxu0 0.0
    %74 = vmatprep.subr.mxu0 0.0
    %75 = vmatpush1.msra.mxu0 0.0
    %76 = vmatprep.subr.mxu0 0.0
    %77 = vmatpush1.msra.mxu0 0.0
    %78 = vmatprep.subr.mxu0 %v46
    %79 = vmatpush1.msra.mxu0 %v44
    %80 = vmatprep.subr.mxu0 0.0
    %81 = vmatpush2.msra.mxu0 0.0
    %82 = vmatprep.subr.mxu0 0.0
    %83 = vmatpush2.msra.mxu0 0.0
    %84 = vmatprep.subr.mxu0 0.0
    %85 = vmatpush2.msra.mxu0 0.0
    %86 = vmatprep.subr.mxu0 0.0
    %87 = vmatpush2.msra.mxu0 0.0
    %88 = vmatprep.subr.mxu0 0.0
    %89 = vmatpush2.msra.mxu0 0.0
    %90 = vmatprep.subr.mxu0 0.0
    %91 = vmatpush2.msra.mxu0 0.0
    %92 = vmatprep.subr.mxu0 0.0
    %93 = vmatpush2.msra.mxu0 0.0
    %94 = vmatprep.subr.mxu0 0.0
    %95 = vmatpush2.msra.mxu0 0.0
    %96 = vmatprep.subr.mxu0 0.0
    %97 = vmatpush2.msra.mxu0 0.0
    %98 = vmatprep.subr.mxu0 0.0
    %99 = vmatpush2.msra.mxu0 0.0
    %100 = vmatprep.subr.mxu0 0.0
    %101 = vmatpush2.msra.mxu0 0.0
    %102 = vmatprep.subr.mxu0 0.0
    %103 = vmatpush2.msra.mxu0 0.0
    %104 = vmatprep.subr.mxu0 0.0
    %105 = vmatpush2.msra.mxu0 0.0
    %106 = vmatprep.subr.mxu0 0.0
    %107 = vmatpush2.msra.mxu0 0.0
    %108 = vmatprep.subr.mxu0 0.0
    %109 = vmatpush2.msra.mxu0 0.0
    %110 = vmatprep.subr.mxu0 0.0
    %111 = vmatpush2.msra.mxu0 0.0
    %112 = vmatprep.mubr.f32.mxu0 0.0
    %113 = vmatmul.mubr.f32.gmra.mxu0 %v26
    %v114 = vpop.f32.mrf.mxu0
    %v115 = vadd.f32 0.0, %v114
    %v116 = vpop.f32.mrf.mxu0
    %v117 = vadd.f32 0.0, %v116
    %118 = vmatprep.mubr.f32.mxu0 0.0
    %119 = vmatmul.mubr.f32.gmra.mxu0 %v29
    %v120 = vpop.f32.mrf.mxu0
    %v121 = vadd.f32 0.0, %v120
    %v122 = vpop.f32.mrf.mxu0
    %v123 = vadd.f32 0.0, %v122
    %124 = vmatprep.mubr.f32.mxu0 0.0
    %125 = vmatmul.mubr.f32.gmra.mxu0 %v32
    %v126 = vpop.f32.mrf.mxu0
    %v127 = vadd.f32 0.0, %v126
    %v128 = vpop.f32.mrf.mxu0
    %v129 = vadd.f32 0.0, %v128
    %130 = vmatprep.mubr.f32.mxu0 0.0
    %131 = vmatmul.mubr.f32.gmra.mxu0 %v35
    %v132 = vpop.f32.mrf.mxu0
    %v133 = vadd.f32 0.0, %v132
    %v134 = vpop.f32.mrf.mxu0
    %v135 = vadd.f32 0.0, %v134
    %136 = vmatprep.mubr.f32.mxu0 0.0
    %137 = vmatmul.mubr.f32.gmra.mxu0 %v38
    %v138 = vpop.f32.mrf.mxu0
    %v139 = vadd.f32 0.0, %v138
    %v140 = vpop.f32.mrf.mxu0
    %v141 = vadd.f32 0.0, %v140
    %142 = vmatprep.mubr.f32.mxu0 0.0
    %143 = vmatmul.mubr.f32.gmra.mxu0 %v41
    %v144 = vpop.f32.mrf.mxu0
    %v145 = vadd.f32 0.0, %v144
    %v146 = vpop.f32.mrf.mxu0
    %v147 = vadd.f32 0.0, %v146
    %148 = vdwg.mxu0
    %v149 = vmax.f32 %v115, 0.0
    %v150 = vmax.f32 %v117, 0.0
    %v151 = vmax.f32 %v121, 0.0
    %v152 = vmax.f32 %v123, 0.0
    %v153 = vmax.f32 %v127, 0.0
    %v154 = vmax.f32 %v129, 0.0
    %v155 = vmax.f32 %v133, 0.0
    %v156 = vmax.f32 %v135, 0.0
    %v157 = vmax.f32 %v139, 0.0
    %v158 = vmax.f32 %v141, 0.0
    %v159 = vmax.f32 %v145, 0.0
    %v160 = vmax.f32 %v147, 0.0
    %v161 = vld [vmem:[%s2] sm:$0x3]
    %vm162 = vcmask 392192
    %v164 = vsel %vm162, %v161, 0
    %166 = vmatprep.subr.mxu0 0.0
    %167 = vmatpush1.msra.mxu0 0.0
    %168 = vmatprep.subr.mxu0 0.0
    %169 = vmatpush1.msra.mxu0 0.0
    %170 = vmatprep.subr.mxu0 0.0
    %171 = vmatpush1.msra.mxu0 0.0
    %172 = vmatprep.subr.mxu0 0.0
    %173 = vmatpush1.msra.mxu0 0.0
    %174 = vmatprep.subr.mxu0 0.0
    %175 = vmatpush1.msra.mxu0 0.0
    %176 = vmatprep.subr.mxu0 0.0
    %177 = vmatpush1.msra.mxu0 0.0
    %178 = vmatprep.subr.mxu0 0.0
    %179 = vmatpush1.msra.mxu0 0.0
    %180 = vmatprep.subr.mxu0 0.0
    %181 = vmatpush1.msra.mxu0 0.0
    %182 = vmatprep.subr.mxu0 0.0
    %183 = vmatpush1.msra.mxu0 0.0
    %184 = vmatprep.subr.mxu0 0.0
    %185 = vmatpush1.msra.mxu0 0.0
    %186 = vmatprep.subr.mxu0 %v160
    %187 = vmatpush1.msra.mxu0 %v159
    %188 = vmatprep.subr.mxu0 %v158
    %189 = vmatpush1.msra.mxu0 %v157
    %190 = vmatprep.subr.mxu0 %v156
    %191 = vmatpush1.msra.mxu0 %v155
    %192 = vmatprep.subr.mxu0 %v154
    %193 = vmatpush1.msra.mxu0 %v153
    %194 = vmatprep.subr.mxu0 %v152
    %195 = vmatpush1.msra.mxu0 %v151
    %196 = vmatprep.subr.mxu0 %v150
    %197 = vmatpush1.msra.mxu0 %v149
    %198 = vmatprep.subr.mxu0 0.0
    %199 = vmatpush2.msra.mxu0 0.0
    %200 = vmatprep.subr.mxu0 0.0
    %201 = vmatpush2.msra.mxu0 0.0
    %202 = vmatprep.subr.mxu0 0.0
    %203 = vmatpush2.msra.mxu0 0.0
    %204 = vmatprep.subr.mxu0 0.0
    %205 = vmatpush2.msra.mxu0 0.0
    %206 = vmatprep.subr.mxu0 0.0
    %207 = vmatpush2.msra.mxu0 0.0
    %208 = vmatprep.subr.mxu0 0.0
    %209 = vmatpush2.msra.mxu0 0.0
    %210 = vmatprep.subr.mxu0 0.0
    %211 = vmatpush2.msra.mxu0 0.0
    %212 = vmatprep.subr.mxu0 0.0
    %213 = vmatpush2.msra.mxu0 0.0
    %214 = vmatprep.subr.mxu0 0.0
    %215 = vmatpush2.msra.mxu0 0.0
    %216 = vmatprep.subr.mxu0 0.0
    %217 = vmatpush2.msra.mxu0 0.0
    %218 = vmatprep.subr.mxu0 0.0
    %219 = vmatpush2.msra.mxu0 0.0
    %220 = vmatprep.subr.mxu0 0.0
    %221 = vmatpush2.msra.mxu0 0.0
    %222 = vmatprep.subr.mxu0 0.0
    %223 = vmatpush2.msra.mxu0 0.0
    %224 = vmatprep.subr.mxu0 0.0
    %225 = vmatpush2.msra.mxu0 0.0
    %226 = vmatprep.subr.mxu0 0.0
    %227 = vmatpush2.msra.mxu0 0.0
    %228 = vmatprep.subr.mxu0 0.0
    %229 = vmatpush2.msra.mxu0 0.0
    %230 = vmatprep.mubr.f32.mxu0 0.0
    %231 = vmatmul.mubr.f32.gmra.mxu0 %v164
    %v232 = vpop.f32.mrf.mxu0
    %v233 = vadd.f32 0.0, %v232
    %v234 = vpop.f32.mrf.mxu0
    %v235 = vadd.f32 0.0, %v234
    %236 = vdwg.mxu0
    %vm237 = vcmask 1041408
    %v238 = vsel %vm237, %v233, -inf
    %v239 = vrot.slane %v238, 4
    %v240 = vmax.f32 %v238, %v239
    %v241 = vrot.slane %v240, 2
    %v242 = vmax.f32 %v240, %v241
    %v243 = vrot.slane %v242, 1
    %v244 = vmax.f32 %v242, %v243
    %v245 = vsel %vm237, %v235, -inf
    %v246 = vrot.slane %v245, 4
    %v247 = vmax.f32 %v245, %v246
    %v248 = vrot.slane %v247, 2
    %v249 = vmax.f32 %v247, %v248
    %v250 = vrot.slane %v249, 1
    %v251 = vmax.f32 %v249, %v250
    %v252 = vsub.f32 %v233, %v244
    %v253 = vsub.f32 %v235, %v251
    %v254 = vmul.f32 %v252, 1.442695
    %v255 = vpow.pop %v254
    %v256 = vmul.f32 %v253, 1.442695
    %v257 = vpow.pop %v256
    %v258 = vsel %vm237, %v255, 0.0
    %v259 = vrot.slane %v258, 4
    %v260 = vadd.f32 %v258, %v259
    %v261 = vrot.slane %v260, 2
    %v262 = vadd.f32 %v260, %v261
    %v263 = vrot.slane %v262, 1
    %v264 = vadd.f32 %v262, %v263
    %v265 = vsel %vm237, %v257, 0.0
    %v266 = vrot.slane %v265, 4
    %v267 = vadd.f32 %v265, %v266
    %v268 = vrot.slane %v267, 2
    %v269 = vadd.f32 %v267, %v268
    %v270 = vrot.slane %v269, 1
    %v271 = vadd.f32 %v269, %v270
    %v272 = vrcp.pop %v264
    %v273 = vrcp.pop %v271
    %v274 = vmul.f32 %v255, %v272
    %v275 = vmul.f32 %v257, %v273
    %v278 = vcombine.low %v274, %v275
    %v280 = vunpack.c.l.s4 1983009808
    %v281 = vunpack.c.0.s8 %v280
    %v282 = vlaneseq
    %v283 = vshrl.u32 %v282, 7
    %v284 = vsub.s32 %v281, %v283
    %v285 = vrot.slane %v278, %v284
    %287 = vst [vmem:[#allocation2] sm:$0xf] %v285
    // Predicated region
    $region14: #{dqn_forward_t.1} parent=1 // pred_check
      _
    $region15: #{dqn_forward_t.1} parent=1 // pred_check_branch
      %289 = sbr.rel (0) target = $region17
    $region16: #{dqn_forward_t.1} parent=1 // pred_region
      %s291 = ssub.s32 64, 64
      %292 = vsyncadd [#allocation3], %s291
      %s294 = sshll.u32 [#allocation2], 4
      %s295 = int_to_ptr.vmem [resolvable:$true] %s294
      %297 = dma.vmem_to_hbm [thread:$0]  %s295, 64, %s3, [#allocation3]
    $region17: #{dqn_forward_t.1} parent=1 // pred_fallthru
      _
    // Predicated region
    $region18: #{dqn_forward_t.1} parent=1 // pred_check
      _
    $region19: #{dqn_forward_t.1} parent=1 // pred_check_branch
      %299 = sbr.rel (0) target = $region21
    $region20: #{dqn_forward_t.1} parent=1 // pred_region
      %300 = dma.done [#allocation3], 64
    $region21: #{dqn_forward_t.1} parent=1 // pred_fallthru
      _
    %301 = vsyncpa [#allocation3], 1

</llo_original>
